<compile_context>
chip_gen: v6e
topology: v6e:2x2x1
jax: 0.10.0
libtpu: 0.0.40
codegen_flags: <defaults>
</compile_context>

<pallas_src>
import functools

import jax
import jax.numpy as jnp
import numpy as np
from jax import lax
from jax.experimental import pallas as pl
from jax.experimental.pallas import tpu as pltpu


# ------------------------------ fused kernel ------------------------------- #

def _se_block_kernel(x_ref, w1_ref, b1_ref, eca_ref, w2_ref, b2_ref,
                     o_ref, xpad_ref, *, B, H, W, C):
    """Fused conv3x3 -> ECA -> conv3x3 -> +identity for B images.

    x_ref   : (B, H, W*C)     lane-dense input images (f32)
    w*_ref  : (3, W*C, W*C)   band conv weights, column padding folded in
    b*_ref  : (1, W*C)        bias replicated across the W lane-groups (f32)
    eca_ref : (W*C, W*C)      block-Toeplitz ECA pool+conv matrix, 1/(H*W) folded in (f32)
    o_ref   : (B, H, W*C)     lane-dense output
    xpad_ref: (B, H+2, W*C)   row-padded activation scratch (MXU operand dtype)
    """
    WC = W * C
    M = B * H

    def conv3x3(w_ref, b_ref):
        # 'same' 3x3 conv on the lane-dense slab as 3 row-tap matmuls; the band
        # weight folds the dx shift, channel mixing AND the zero column padding
        # into one dense K = W*C contraction.
        # TODO(synk): once M = B*H >= 128, fuse the 3 dy taps into a single
        # K = 3*W*C contraction (stage a (M, 3*W*C) slab) -- a wash at small M.
        acc = None
        for dy in range(w_ref.shape[0]):                       # statically unrolled (3)
            lhs = xpad_ref[:, pl.ds(dy, H), :].reshape(M, WC)  # already MXU dtype
            part = jnp.dot(lhs, w_ref[dy], preferred_element_type=jnp.float32)
            acc = part if acc is None else acc + part
        return acc + b_ref[...]                                # (M, W*C) f32

    x3d = x_ref[...]                                           # load once: conv1 input + residual

    # Zero only the 2 halo rows (the interior is fully overwritten just below,
    # and the halo is reused as-is for conv2).
    zero_row = jnp.zeros((B, 1, WC), xpad_ref.dtype)
    xpad_ref[:, pl.ds(0, 1), :] = zero_row
    xpad_ref[:, pl.ds(H + 1, 1), :] = zero_row

    # conv1 (single cast on store; taps load the MXU dtype directly).
    xpad_ref[:, pl.ds(1, H), :] = x3d.astype(xpad_ref.dtype)
    y = conv3x3(w1_ref, b1_ref).reshape(B, H, WC)              # f32

    # ECA: global-avg-pool + k-tap channel conv.  By linearity, reduce over H
    # first, then one (B, W*C) x (W*C, W*C) dot; the 1/(H*W) pooling scale is
    # already folded into eca_ref.  The result is the per-channel logit
    # replicated across all W lane-groups -- no narrow (1, C) work.
    ysum = jnp.sum(y, axis=1)                                  # (B, W*C) f32
    att = jnp.dot(ysum, eca_ref[...], preferred_element_type=jnp.float32)
    y = y * jax.nn.sigmoid(att)[:, None, :]                    # channel attention scale (f32)

    # conv2 (reuse the scratch; halo rows are still zero) + residual add.
    xpad_ref[:, pl.ds(1, H), :] = y.astype(xpad_ref.dtype)
    y2 = conv3x3(w2_ref, b2_ref).reshape(B, H, WC)
    o_ref[...] = (y2 + x3d.astype(jnp.float32)).astype(o_ref.dtype)


# --------------------------- wrapper-side packing --------------------------- #

def _build_band_weights(w_hwio, W):
    """(3,3,Cin,Cout) HWIO conv weight -> (3, W*Cin, W*Cout) band matrices with
    the 'same' column padding folded in (out-of-range columns are zero):

      big[dy, wi*Cin+ci, wo*Cout+co] = w[dy, wi-wo+1, ci, co]  if |wi-wo| <= 1 else 0
    """
    KH, KW, Cin, Cout = w_hwio.shape
    p = (KW - 1) // 2
    wi = jnp.arange(W)[None, :, None]
    wo = jnp.arange(W)[None, None, :]
    dx = jnp.arange(KW)[:, None, None]
    ind = (wi == wo + dx - p).astype(w_hwio.dtype)             # (KW, W, W)
    big = jnp.einsum('dab,ydio->yaibo', ind, w_hwio)           # (KH, W, Cin, W, Cout)
    return big.reshape(KH, W * Cin, W * Cout)


def _build_eca_matrix(w_eca, W, C, H):
    """ECA k-tap Conv1d (zero padded) + global-avg-pool as a (W*C, W*C) matrix
    with the 1/(H*W) pooling scale folded in.

      M[(w,ci),(w',co)] = w_eca[ci - co + p] / (H*W)   if 0 <= ci - co + p < k else 0

    so (H-reduced activation row) @ M yields the per-channel conv logit already
    replicated across all W lane-groups.
    """
    k = w_eca.shape[0]
    p = (k - 1) // 2
    c = jnp.arange(C)
    d = c[:, None] - c[None, :] + p                            # (Cin, Cout)
    valid = (d >= 0) & (d < k)
    t0 = jnp.where(valid, w_eca[jnp.clip(d, 0, k - 1)], 0.0)   # (Cin, Cout)
    return (jnp.tile(t0, (W, W)) / float(H * W)).astype(jnp.float32)


def _pick_block_images(N, H):
    """B images per grid step: target B*H ~ 128 MXU rows, keep >= 2 grid blocks
    (one per v7x TensorCore) when possible, and require B | N.

    At these shapes VMEM use is tiny; when scaling C/H/W/B, budget against
    v7x's 64 MiB (not v6e's 128 MiB): 2x double-buffered (B,H,W*C) in/out
    blocks + (B,H+2,W*C) scratch + band weights.
    """
    target = min(N, max(1, 128 // max(H, 1)))
    if N >= 2 and N // target < 2:
        target = max(1, N // 2)
    while N % target:
        target -= 1
    return target


def se_block_forward_nhwc(x_nhwc, w1, b1, w_eca, w2, b2, *,
                          mxu_dtype=jnp.bfloat16, block_images=None):
    """Matches SEBlock.forward: conv1 -> ECA -> conv2 -> + identity.

    I/O is lane-dense NHWC end to end (no layout transposes, no extra HBM
    passes).  mxu_dtype is the conv-operand dtype on the MXU (bf16 is valid on
    v5e/v6e/v7x; accumulation and all VPU math stay f32).
    """
    N, H, W, C = x_nhwc.shape
    WC = W * C
    x = x_nhwc.reshape(N, H, WC)                               # pure view: NHWC is lane-dense

    B = _pick_block_images(N, H) if block_images is None else block_images
    if N % B:
        raise ValueError(f"block_images={B} must divide N={N}")

    w1b = _build_band_weights(w1, W).astype(mxu_dtype)         # (3, W*C, W*C)
    w2b = _build_band_weights(w2, W).astype(mxu_dtype)
    b1l = jnp.tile(b1.astype(jnp.float32), (1, W))             # (1, W*C)
    b2l = jnp.tile(b2.astype(jnp.float32), (1, W))
    eca = _build_eca_matrix(w_eca, W, C, H)                    # (W*C, W*C) f32, 1/(H*W) folded

    # Note: the constant-index operands (w1b, b1l, eca, w2b, b2l) could use
    # pipeline_mode=pl.Buffered(1) to avoid redundant double-buffering; at
    # C=8 / W=16 their footprint is negligible so we keep the default.
    kern = functools.partial(_se_block_kernel, B=B, H=H, W=W, C=C)
    out = pl.pallas_call(
        kern,
        out_shape=jax.ShapeDtypeStruct((N, H, WC), x_nhwc.dtype),
        grid_spec=pltpu.PrefetchScalarGridSpec(
            num_scalar_prefetch=0,
            grid=(N // B,),
            in_specs=[
                pl.BlockSpec((B, H, WC), lambda n: (n, 0, 0)),      # x (lane-dense)
                pl.BlockSpec(w1b.shape, lambda n: (0, 0, 0)),       # conv1 band weights
                pl.BlockSpec((1, WC), lambda n: (0, 0)),            # conv1 bias (lane-rep)
                pl.BlockSpec((WC, WC), lambda n: (0, 0)),           # ECA matrix
                pl.BlockSpec(w2b.shape, lambda n: (0, 0, 0)),       # conv2 band weights
                pl.BlockSpec((1, WC), lambda n: (0, 0)),            # conv2 bias (lane-rep)
            ],
            out_specs=pl.BlockSpec((B, H, WC), lambda n: (n, 0, 0)),
            scratch_shapes=[pltpu.VMEM((B, H + 2, WC), mxu_dtype)],
        ),
        compiler_params=pltpu.CompilerParams(
            dimension_semantics=("parallel",)),
    )(x, w1b, b1l, eca, w2b, b2l)

    return out.reshape(N, H, W, C)


def se_block_forward_nchw(x_nchw, w1, b1, w_eca, w2, b2, **kw):
    """Convenience NCHW adapter (explicit layout conversion outside the kernel).
    Prefer keeping tensors NHWC end to end to avoid the extra HBM passes."""
    x_nhwc = jnp.transpose(x_nchw, (0, 2, 3, 1))
    out = se_block_forward_nhwc(x_nhwc, w1, b1, w_eca, w2, b2, **kw)
    return jnp.transpose(out, (0, 3, 1, 2))


# --------------------------- pure-JAX reference ---------------------------- #

def ref_forward(x_nchw, w1, b1, w_eca, w2, b2):
    def conv2d(x, w, b):
        out = lax.conv_general_dilated(
            x, jnp.transpose(w, (3, 2, 0, 1)),
            window_strides=(1, 1), padding=((1, 1), (1, 1)),
            dimension_numbers=('NCHW', 'OIHW', 'NCHW'))
        return out + b[0][None, :, None, None]

    y = conv2d(x_nchw, w1, b1)
    ym = jnp.mean(y, axis=(2, 3))                              # (N, C)
    k = w_eca.shape[0]
    p = (k - 1) // 2
    ypad = jnp.pad(ym, ((0, 0), (p, p)))
    s = sum(w_eca[j] * ypad[:, j:j + ym.shape[1]] for j in range(k))
    s = jax.nn.sigmoid(s)
    y = y * s[:, :, None, None]
    out = conv2d(y, w2, b2)
    return out + x_nchw


# ---------------------------------- main ----------------------------------- #

if __name__ == "__main__":
    N, C, H, W = 2, 8, 16, 16
    key = jax.random.PRNGKey(0)
    k1, k2, k3, k4, k5, k6 = jax.random.split(key, 6)

    x = jax.random.normal(k1, (N, C, H, W), jnp.float32)       # NCHW, as in the PyTorch spec

    # deterministic synthetic parameters (shapes from the module's __init__)
    w1 = jax.random.normal(k2, (3, 3, C, C), jnp.float32) * 0.1    # conv1 weight (HWIO)
    b1 = jax.random.normal(k3, (1, C), jnp.float32) * 0.1          # conv1 bias
    w2 = jax.random.normal(k4, (3, 3, C, C), jnp.float32) * 0.1    # conv2 weight (HWIO)
    b2 = jax.random.normal(k5, (1, C), jnp.float32) * 0.1          # conv2 bias

    # ECA kernel size (same formula as the PyTorch module): C=8 -> k=3
    k_size = int(abs((np.log2(C) + 1) / 2))
    k_size = k_size if k_size % 2 else k_size + 1
    w_eca = jax.random.normal(k6, (k_size,), jnp.float32) * 0.5    # Conv1d(1,1,k) weight, no bias

    ref = ref_forward(x, w1, b1, w_eca, w2, b2)
    ref_nhwc = jnp.transpose(ref, (0, 2, 3, 1))

    # One-time test-harness layout conversion; the kernel path itself is NHWC
    # end to end with no transposes.
    x_nhwc = jnp.transpose(x, (0, 2, 3, 1))

    # f32 MXU path: tight check against the f32 reference.
    out_f32 = se_block_forward_nhwc(x_nhwc, w1, b1, w_eca, w2, b2,
                                    mxu_dtype=jnp.float32)
    out_f32 = jax.block_until_ready(out_f32)
    np.testing.assert_allclose(np.asarray(out_f32), np.asarray(ref_nhwc),
                               rtol=1e-3, atol=1e-3)

    # bf16 MXU operand path (valid on v5e/v6e/v7x; f32 accumulation). Error
    # compounds through both bf16 convs, so 5e-2 is the expected tolerance.
    out_bf16 = se_block_forward_nhwc(x_nhwc, w1, b1, w_eca, w2, b2,
                                     mxu_dtype=jnp.bfloat16)
    out_bf16 = jax.block_until_ready(out_bf16)
    np.testing.assert_allclose(np.asarray(out_bf16), np.asarray(ref_nhwc),
                               rtol=5e-2, atol=5e-2)

    print("KERNEL_OK")
</pallas_src>

<mosaic_0001>
module attributes {stable_mosaic.version = 11 : i64} {
  func.func @_se_block_kernel(%arg0: i32, %arg1: memref<1x16x128xf32, #tpu.memory_space<vmem>>, %arg2: memref<3x128x128xf32, #tpu.memory_space<vmem>>, %arg3: memref<1x128xf32, #tpu.memory_space<vmem>>, %arg4: memref<128x128xf32, #tpu.memory_space<vmem>>, %arg5: memref<3x128x128xf32, #tpu.memory_space<vmem>>, %arg6: memref<1x128xf32, #tpu.memory_space<vmem>>, %arg7: memref<1x16x128xf32, #tpu.memory_space<vmem>>, %arg8: memref<1x18x128xf32, #tpu.memory_space<vmem>>) attributes {dimension_semantics = [#tpu.dimension_semantics<parallel>], iteration_bounds = array<i64: 2>, scalar_prefetch = 0 : i64, scratch_operands = 1 : i64, tpu.core_type = #tpu.core_type<tc>, window_params = [{transform_indices = @transform_0, window_bounds = array<i64: 1, 16, 128>}, {pipeline_mode = #tpu.pipeline_mode<synchronous>, transform_indices = @transform_1, window_bounds = array<i64: 3, 128, 128>}, {pipeline_mode = #tpu.pipeline_mode<synchronous>, transform_indices = @transform_2, window_bounds = array<i64: 1, 128>}, {pipeline_mode = #tpu.pipeline_mode<synchronous>, transform_indices = @transform_3, window_bounds = array<i64: 128, 128>}, {pipeline_mode = #tpu.pipeline_mode<synchronous>, transform_indices = @transform_4, window_bounds = array<i64: 3, 128, 128>}, {pipeline_mode = #tpu.pipeline_mode<synchronous>, transform_indices = @transform_5, window_bounds = array<i64: 1, 128>}, {transform_indices = @transform_6, window_bounds = array<i64: 1, 16, 128>}]} {
    %c0 = arith.constant 0 : index
    %c0_0 = arith.constant 0 : index
    %c0_1 = arith.constant 0 : index
    %0 = vector.load %arg1[%c0, %c0_0, %c0_1] : memref<1x16x128xf32, #tpu.memory_space<vmem>>, vector<1x16x128xf32>
    %cst = arith.constant 0.000000e+00 : f32
    %1 = vector.broadcast %cst : f32 to vector<1x1x128xf32>
    %c0_2 = arith.constant 0 : index
    %c0_3 = arith.constant 0 : index
    %c0_4 = arith.constant 0 : index
    %2 = vector.load %arg8[%c0_2, %c0_3, %c0_4] : memref<1x18x128xf32, #tpu.memory_space<vmem>>, vector<1x1x128xf32>
    tpu.vector_store %arg8[%c0_2, %c0_3, %c0_4], %1 {strides = array<i32>} : memref<1x18x128xf32, #tpu.memory_space<vmem>>, vector<1x1x128xf32>,
    %c0_5 = arith.constant 0 : index
    %c17 = arith.constant 17 : index
    %c0_6 = arith.constant 0 : index
    %3 = vector.load %arg8[%c0_5, %c17, %c0_6] : memref<1x18x128xf32, #tpu.memory_space<vmem>>, vector<1x1x128xf32>
    tpu.vector_store %arg8[%c0_5, %c17, %c0_6], %1 {strides = array<i32>} : memref<1x18x128xf32, #tpu.memory_space<vmem>>, vector<1x1x128xf32>,
    %c0_7 = arith.constant 0 : index
    %c1 = arith.constant 1 : index
    %c0_8 = arith.constant 0 : index
    %4 = vector.load %arg8[%c0_7, %c1, %c0_8] : memref<1x18x128xf32, #tpu.memory_space<vmem>>, vector<1x16x128xf32>
    tpu.vector_store %arg8[%c0_7, %c1, %c0_8], %0 {strides = array<i32>} : memref<1x18x128xf32, #tpu.memory_space<vmem>>, vector<1x16x128xf32>,
    %c0_9 = arith.constant 0 : index
    %c0_10 = arith.constant 0 : index
    %c0_11 = arith.constant 0 : index
    %5 = vector.load %arg8[%c0_9, %c0_10, %c0_11] : memref<1x18x128xf32, #tpu.memory_space<vmem>>, vector<1x16x128xf32>
    %6 = vector.shape_cast %5 : vector<1x16x128xf32> to vector<16x128xf32>
    %c0_12 = arith.constant 0 : index
    %c0_13 = arith.constant 0 : index
    %c0_14 = arith.constant 0 : index
    %7 = vector.load %arg2[%c0_12, %c0_13, %c0_14] : memref<3x128x128xf32, #tpu.memory_space<vmem>>, vector<1x128x128xf32>
    %8 = vector.shape_cast %7 : vector<1x128x128xf32> to vector<128x128xf32>
    %cst_15 = arith.constant dense<0.000000e+00> : vector<16x128xf32>
    %9 = tpu.matmul %6, %8, %cst_15 {dimension_numbers = #tpu.dot_dimension_numbers<[1], [0], [0], [1], [0, 0, 1, 1], [], []>} : vector<16x128xf32>, vector<128x128xf32>, vector<16x128xf32> -> vector<16x128xf32>
    %c0_16 = arith.constant 0 : index
    %c1_17 = arith.constant 1 : index
    %c0_18 = arith.constant 0 : index
    %10 = vector.load %arg8[%c0_16, %c1_17, %c0_18] : memref<1x18x128xf32, #tpu.memory_space<vmem>>, vector<1x16x128xf32>
    %11 = vector.shape_cast %10 : vector<1x16x128xf32> to vector<16x128xf32>
    %c1_19 = arith.constant 1 : index
    %c0_20 = arith.constant 0 : index
    %c0_21 = arith.constant 0 : index
    %12 = vector.load %arg2[%c1_19, %c0_20, %c0_21] : memref<3x128x128xf32, #tpu.memory_space<vmem>>, vector<1x128x128xf32>
    %13 = vector.shape_cast %12 : vector<1x128x128xf32> to vector<128x128xf32>
    %cst_22 = arith.constant dense<0.000000e+00> : vector<16x128xf32>
    %14 = tpu.matmul %11, %13, %cst_22 {dimension_numbers = #tpu.dot_dimension_numbers<[1], [0], [0], [1], [0, 0, 1, 1], [], []>} : vector<16x128xf32>, vector<128x128xf32>, vector<16x128xf32> -> vector<16x128xf32>
    %15 = arith.addf %9, %14 : vector<16x128xf32>
    %c0_23 = arith.constant 0 : index
    %c2 = arith.constant 2 : index
    %c0_24 = arith.constant 0 : index
    %16 = vector.load %arg8[%c0_23, %c2, %c0_24] : memref<1x18x128xf32, #tpu.memory_space<vmem>>, vector<1x16x128xf32>
    %17 = vector.shape_cast %16 : vector<1x16x128xf32> to vector<16x128xf32>
    %c2_25 = arith.constant 2 : index
    %c0_26 = arith.constant 0 : index
    %c0_27 = arith.constant 0 : index
    %18 = vector.load %arg2[%c2_25, %c0_26, %c0_27] : memref<3x128x128xf32, #tpu.memory_space<vmem>>, vector<1x128x128xf32>
    %19 = vector.shape_cast %18 : vector<1x128x128xf32> to vector<128x128xf32>
    %cst_28 = arith.constant dense<0.000000e+00> : vector<16x128xf32>
    %20 = tpu.matmul %17, %19, %cst_28 {dimension_numbers = #tpu.dot_dimension_numbers<[1], [0], [0], [1], [0, 0, 1, 1], [], []>} : vector<16x128xf32>, vector<128x128xf32>, vector<16x128xf32> -> vector<16x128xf32>
    %21 = arith.addf %15, %20 : vector<16x128xf32>
    %c0_29 = arith.constant 0 : index
    %c0_30 = arith.constant 0 : index
    %22 = vector.load %arg3[%c0_29, %c0_30] : memref<1x128xf32, #tpu.memory_space<vmem>>, vector<1x128xf32>
    %23 = vector.broadcast %22 : vector<1x128xf32> to vector<16x128xf32>
    %24 = arith.addf %21, %23 : vector<16x128xf32>
    %25 = vector.shape_cast %24 : vector<16x128xf32> to vector<1x16x128xf32>
    %cst_31 = arith.constant dense<0.000000e+00> : vector<1x128xf32>
    %26 = vector.multi_reduction <add>, %25, %cst_31 [1] : vector<1x16x128xf32> to vector<1x128xf32>
    %c0_32 = arith.constant 0 : index
    %c0_33 = arith.constant 0 : index
    %27 = vector.load %arg4[%c0_32, %c0_33] : memref<128x128xf32, #tpu.memory_space<vmem>>, vector<128x128xf32>
    %cst_34 = arith.constant dense<0.000000e+00> : vector<1x128xf32>
    %28 = tpu.matmul %26, %27, %cst_34 {dimension_numbers = #tpu.dot_dimension_numbers<[1], [0], [0], [1], [0, 0, 1, 1], [], []>} : vector<1x128xf32>, vector<128x128xf32>, vector<1x128xf32> -> vector<1x128xf32>
    %29 = arith.negf %28 : vector<1x128xf32>
    %30 = math.exp %29 : vector<1x128xf32>
    %cst_35 = arith.constant 1.000000e+00 : f32
    %31 = vector.broadcast %cst_35 : f32 to vector<1x128xf32>
    %32 = arith.addf %31, %30 : vector<1x128xf32>
    %33 = arith.divf %31, %32 : vector<1x128xf32>
    %34 = vector.shape_cast %33 : vector<1x128xf32> to vector<1x1x128xf32>
    %35 = vector.broadcast %34 : vector<1x1x128xf32> to vector<1x16x128xf32>
    %36 = arith.mulf %25, %35 : vector<1x16x128xf32>
    %c0_36 = arith.constant 0 : index
    %c1_37 = arith.constant 1 : index
    %c0_38 = arith.constant 0 : index
    %37 = vector.load %arg8[%c0_36, %c1_37, %c0_38] : memref<1x18x128xf32, #tpu.memory_space<vmem>>, vector<1x16x128xf32>
    tpu.vector_store %arg8[%c0_36, %c1_37, %c0_38], %36 {strides = array<i32>} : memref<1x18x128xf32, #tpu.memory_space<vmem>>, vector<1x16x128xf32>,
    %c0_39 = arith.constant 0 : index
    %c0_40 = arith.constant 0 : index
    %c0_41 = arith.constant 0 : index
    %38 = vector.load %arg8[%c0_39, %c0_40, %c0_41] : memref<1x18x128xf32, #tpu.memory_space<vmem>>, vector<1x16x128xf32>
    %39 = vector.shape_cast %38 : vector<1x16x128xf32> to vector<16x128xf32>
    %c0_42 = arith.constant 0 : index
    %c0_43 = arith.constant 0 : index
    %c0_44 = arith.constant 0 : index
    %40 = vector.load %arg5[%c0_42, %c0_43, %c0_44] : memref<3x128x128xf32, #tpu.memory_space<vmem>>, vector<1x128x128xf32>
    %41 = vector.shape_cast %40 : vector<1x128x128xf32> to vector<128x128xf32>
    %cst_45 = arith.constant dense<0.000000e+00> : vector<16x128xf32>
    %42 = tpu.matmul %39, %41, %cst_45 {dimension_numbers = #tpu.dot_dimension_numbers<[1], [0], [0], [1], [0, 0, 1, 1], [], []>} : vector<16x128xf32>, vector<128x128xf32>, vector<16x128xf32> -> vector<16x128xf32>
    %c0_46 = arith.constant 0 : index
    %c1_47 = arith.constant 1 : index
    %c0_48 = arith.constant 0 : index
    %43 = vector.load %arg8[%c0_46, %c1_47, %c0_48] : memref<1x18x128xf32, #tpu.memory_space<vmem>>, vector<1x16x128xf32>
    %44 = vector.shape_cast %43 : vector<1x16x128xf32> to vector<16x128xf32>
    %c1_49 = arith.constant 1 : index
    %c0_50 = arith.constant 0 : index
    %c0_51 = arith.constant 0 : index
    %45 = vector.load %arg5[%c1_49, %c0_50, %c0_51] : memref<3x128x128xf32, #tpu.memory_space<vmem>>, vector<1x128x128xf32>
    %46 = vector.shape_cast %45 : vector<1x128x128xf32> to vector<128x128xf32>
    %cst_52 = arith.constant dense<0.000000e+00> : vector<16x128xf32>
    %47 = tpu.matmul %44, %46, %cst_52 {dimension_numbers = #tpu.dot_dimension_numbers<[1], [0], [0], [1], [0, 0, 1, 1], [], []>} : vector<16x128xf32>, vector<128x128xf32>, vector<16x128xf32> -> vector<16x128xf32>
    %48 = arith.addf %42, %47 : vector<16x128xf32>
    %c0_53 = arith.constant 0 : index
    %c2_54 = arith.constant 2 : index
    %c0_55 = arith.constant 0 : index
    %49 = vector.load %arg8[%c0_53, %c2_54, %c0_55] : memref<1x18x128xf32, #tpu.memory_space<vmem>>, vector<1x16x128xf32>
    %50 = vector.shape_cast %49 : vector<1x16x128xf32> to vector<16x128xf32>
    %c2_56 = arith.constant 2 : index
    %c0_57 = arith.constant 0 : index
    %c0_58 = arith.constant 0 : index
    %51 = vector.load %arg5[%c2_56, %c0_57, %c0_58] : memref<3x128x128xf32, #tpu.memory_space<vmem>>, vector<1x128x128xf32>
    %52 = vector.shape_cast %51 : vector<1x128x128xf32> to vector<128x128xf32>
    %cst_59 = arith.constant dense<0.000000e+00> : vector<16x128xf32>
    %53 = tpu.matmul %50, %52, %cst_59 {dimension_numbers = #tpu.dot_dimension_numbers<[1], [0], [0], [1], [0, 0, 1, 1], [], []>} : vector<16x128xf32>, vector<128x128xf32>, vector<16x128xf32> -> vector<16x128xf32>
    %54 = arith.addf %48, %53 : vector<16x128xf32>
    %c0_60 = arith.constant 0 : index
    %c0_61 = arith.constant 0 : index
    %55 = vector.load %arg6[%c0_60, %c0_61] : memref<1x128xf32, #tpu.memory_space<vmem>>, vector<1x128xf32>
    %56 = vector.broadcast %55 : vector<1x128xf32> to vector<16x128xf32>
    %57 = arith.addf %54, %56 : vector<16x128xf32>
    %58 = vector.shape_cast %57 : vector<16x128xf32> to vector<1x16x128xf32>
    %59 = arith.addf %58, %0 : vector<1x16x128xf32>
    %c0_62 = arith.constant 0 : index
    %c0_63 = arith.constant 0 : index
    %c0_64 = arith.constant 0 : index
    %60 = vector.load %arg7[%c0_62, %c0_63, %c0_64] : memref<1x16x128xf32, #tpu.memory_space<vmem>>, vector<1x16x128xf32>
    tpu.vector_store %arg7[%c0_62, %c0_63, %c0_64], %59 {strides = array<i32>} : memref<1x16x128xf32, #tpu.memory_space<vmem>>, vector<1x16x128xf32>,
    return
  }
  func.func @transform_0(%arg0: i32) -> (i32, i32, i32) {
    %c0_i32 = arith.constant 0 : i32
    %c0_i32_0 = arith.constant 0 : i32
    %c0_i32_1 = arith.constant 0 : i32
    return %arg0, %c0_i32, %c0_i32_0 : i32, i32, i32
  }
  func.func @transform_1(%arg0: i32) -> (i32, i32, i32) {
    %c0_i32 = arith.constant 0 : i32
    %c0_i32_0 = arith.constant 0 : i32
    %c0_i32_1 = arith.constant 0 : i32
    %c0_i32_2 = arith.constant 0 : i32
    return %c0_i32, %c0_i32_0, %c0_i32_1 : i32, i32, i32
  }
  func.func @transform_2(%arg0: i32) -> (i32, i32) {
    %c0_i32 = arith.constant 0 : i32
    %c0_i32_0 = arith.constant 0 : i32
    %c0_i32_1 = arith.constant 0 : i32
    return %c0_i32, %c0_i32_0 : i32, i32
  }
  func.func @transform_3(%arg0: i32) -> (i32, i32) {
    %c0_i32 = arith.constant 0 : i32
    %c0_i32_0 = arith.constant 0 : i32
    %c0_i32_1 = arith.constant 0 : i32
    return %c0_i32, %c0_i32_0 : i32, i32
  }
  func.func @transform_4(%arg0: i32) -> (i32, i32, i32) {
    %c0_i32 = arith.constant 0 : i32
    %c0_i32_0 = arith.constant 0 : i32
    %c0_i32_1 = arith.constant 0 : i32
    %c0_i32_2 = arith.constant 0 : i32
    return %c0_i32, %c0_i32_0, %c0_i32_1 : i32, i32, i32
  }
  func.func @transform_5(%arg0: i32) -> (i32, i32) {
    %c0_i32 = arith.constant 0 : i32
    %c0_i32_0 = arith.constant 0 : i32
    %c0_i32_1 = arith.constant 0 : i32
    return %c0_i32, %c0_i32_0 : i32, i32
  }
  func.func @transform_6(%arg0: i32) -> (i32, i32, i32) {
    %c0_i32 = arith.constant 0 : i32
    %c0_i32_0 = arith.constant 0 : i32
    %c0_i32_1 = arith.constant 0 : i32
    return %arg0, %c0_i32, %c0_i32_0 : i32, i32, i32
  }
}

</mosaic_0001>

<llo_original>
// kernel: tpu_custom_call.1
$region0: #{tpu_custom_call.1}
  #allocation0 [shape = 'u32[]', space=smem, size = 0x4, offset = 0x4, fixed_abs, tag = 'smem constant byte address 0x4 - core index']
  #allocation1 [shape = 'u32[144,128]{1,0:T(1,128)}', space=vmem, size = 0x12000, scoped, tag = 'internal scratch']
  #allocation2 [shape = 'f32[1,18,128]{2,1,0:T(8,128)}', space=vmem, size = 0x3000, scoped, tag = 'scratch operand']
  %s0 = inlined_call_operand.hbm [shape: f32[2,16,128], index: 0, kind: input, shape index: {}]
  %s1 = inlined_call_operand.hbm [shape: f32[3,128,128], index: 1, kind: input, shape index: {}]
  %s2 = inlined_call_operand.vmem [shape: f32[1,128], index: 2, kind: input, shape index: {}]
  %s3 = inlined_call_operand.hbm [shape: f32[128,128], index: 3, kind: input, shape index: {}]
  %s4 = inlined_call_operand.hbm [shape: f32[3,128,128], index: 4, kind: input, shape index: {}]
  %s5 = inlined_call_operand.vmem [shape: f32[1,128], index: 5, kind: input, shape index: {}]
  %s6 = inlined_call_operand.hbm [shape: f32[2,16,128], index: 6, kind: output, shape index: {}]
  %s7 = sld [smem:[#allocation0]]
  $region73: #{tpu_custom_call.1} parent=0
    _
  %s9 = ssub.s32 1, %s7
  %s10 = scalar_select 0, %s9, %s7
  $region1: #{tpu_custom_call.1} parent=0
    #allocation3 [shape = 'u8[16384]{0}', space=vmem, size = 0x4000, scoped, tag = 'input window, operand 0']
    #allocation4 [shape = 's32[2]{0}', space=sflag, size = 0x8, scoped, tag = 'scoped memory for tpu_custom_call.1']
    #allocation5 [shape = 's32[2]{0}', space=sflag, size = 0x8, scoped, tag = 'scoped memory for tpu_custom_call.1']
    #allocation6 [shape = 'u8[196608]{0}', space=vmem, size = 0x30000, scoped, tag = 'input window, operand 1, single buffered']
    #allocation7 [shape = 's32[1]{0}', space=sflag, size = 0x4, scoped, tag = 'scoped memory for tpu_custom_call.1']
    #allocation8 [shape = 'u8[65536]{0}', space=vmem, size = 0x10000, scoped, tag = 'input window, operand 3, single buffered']
    #allocation9 [shape = 'u8[196608]{0}', space=vmem, size = 0x30000, scoped, tag = 'input window, operand 4, single buffered']
    #allocation10 [shape = 's32[1]{0}', space=sflag, size = 0x4, scoped, tag = 'scoped memory for tpu_custom_call.1']
    #allocation11 [shape = 'u8[16384]{0}', space=vmem, size = 0x4000, scoped, tag = 'output window, operand 0']
    %11 = vsyncpa [#allocation4], 0
    %s12 = scalar_lea.sflag [#allocation4], 1
    %13 = vsyncpa %s12, 0
    %14 = vsyncpa [#allocation7], 0
    %15 = vsyncpa [#allocation10], 0
    %16 = vsyncpa [#allocation5], 0
    %s17 = scalar_lea.sflag [#allocation5], 1
    %18 = vsyncpa %s17, 0
    loop: start=0, step=1, limit=4
    $region2: #{tpu_custom_call.1} parent=1 // loop_pre_header
      _
    $region3: #{tpu_custom_call.1} parent=1 // loop_header
      %s20 = sphi 0, %s24
      %p21 = scmp.ge.s32.totalorder %s20, 4
      %s30 = sphi 0, %s32
      %s33 = sphi 0, %s30
      %s34 = sphi 0, %s33
      %s50 = sphi 0, %s34
      %s54 = sphi 0, %s54
      %s56 = sphi 0, %s54
      %s57 = sphi 0, %s56
      %s71 = sphi 0, %s57
      %s75 = sphi 0, %s75
      %s77 = sphi 0, %s75
      %s78 = sphi 0, %s77
      %s92 = sphi 0, %s78
      %s96 = sphi 0, %s96
      %s98 = sphi 0, %s96
      %s99 = sphi 0, %s98
      %s113 = sphi 0, %s99
      %s117 = sphi 0, %s117
      %s119 = sphi 0, %s117
      %s120 = sphi 0, %s119
      %s134 = sphi 0, %s120
      %s138 = sphi 0, %s138
      %s140 = sphi 0, %s138
      %s141 = sphi 0, %s140
      %s155 = sphi 0, %s141
      %s161 = sphi 0, %s163
      %s164 = sphi 0, %s161
      %s165 = sphi 0, %s164
      %s181 = sphi 0, %s165
    $region4: #{tpu_custom_call.1} parent=1 // loop_header_branch
      %23 = sbr.rel (%p21) target = $region8
    $region5: #{tpu_custom_call.1} parent=1 // loop_body
      %s25 = ssub.s32 %s20, 1
      %s26 = ssub.s32 %s20, 2
      %s27 = sadd.s32 %s20, 1
      %s28 = ssub.s32 %s20, %s27
      %p29 = scmp.eq.s32.totalorder %s28, 0
      %s31 = sadd.s32 %s30, 1
      %s32 = scalar_select %p29, %s30, %s31
      %p35 = pneg %p29
      %p36 = scmp.eq.s32.totalorder %s20, 1
      %p37 = por %p35, %p36
      %p38 = scmp.ne.s32.totalorder %s30, %s33
      %p39 = scmp.eq.s32.totalorder %s20, 0
      %p40 = por %p38, %p39
      %p41 = scmp.ne.s32.totalorder %s30, %s33
      %p42 = scmp.eq.s32.totalorder %s25, 1
      %p43 = por %p41, %p42
      %p44 = scmp.ne.s32.totalorder %s33, %s34
      %p45 = scmp.eq.s32.totalorder %s25, 0
      %p46 = por %p44, %p45
      %p47 = scmp.ne.s32.totalorder %s33, %s34
      %p48 = scmp.eq.s32.totalorder %s26, 1
      %p49 = por %p47, %p48
      %p51 = scmp.ne.s32.totalorder %s34, %s50
      %p52 = scmp.eq.s32.totalorder %s26, 0
      %p53 = por %p51, %p52
      %s55 = sadd.s32 %s54, 1
      %p58 = scmp.eq.s32.totalorder %s20, 1
      %p59 = scmp.ne.s32.totalorder %s54, %s56
      %p60 = scmp.eq.s32.totalorder %s20, 0
      %p61 = por %p59, %p60
      %p62 = scmp.ne.s32.totalorder %s54, %s56
      %p63 = scmp.eq.s32.totalorder %s25, 1
      %p64 = por %p62, %p63
      %p65 = scmp.ne.s32.totalorder %s56, %s57
      %p66 = scmp.eq.s32.totalorder %s25, 0
      %p67 = por %p65, %p66
      %p68 = scmp.ne.s32.totalorder %s56, %s57
      %p69 = scmp.eq.s32.totalorder %s26, 1
      %p70 = por %p68, %p69
      %p72 = scmp.ne.s32.totalorder %s57, %s71
      %p73 = scmp.eq.s32.totalorder %s26, 0
      %p74 = por %p72, %p73
      %s76 = sadd.s32 %s75, 1
      %p79 = scmp.eq.s32.totalorder %s20, 1
      %p80 = scmp.ne.s32.totalorder %s75, %s77
      %p81 = scmp.eq.s32.totalorder %s20, 0
      %p82 = por %p80, %p81
      %p83 = scmp.ne.s32.totalorder %s75, %s77
      %p84 = scmp.eq.s32.totalorder %s25, 1
      %p85 = por %p83, %p84
      %p86 = scmp.ne.s32.totalorder %s77, %s78
      %p87 = scmp.eq.s32.totalorder %s25, 0
      %p88 = por %p86, %p87
      %p89 = scmp.ne.s32.totalorder %s77, %s78
      %p90 = scmp.eq.s32.totalorder %s26, 1
      %p91 = por %p89, %p90
      %p93 = scmp.ne.s32.totalorder %s78, %s92
      %p94 = scmp.eq.s32.totalorder %s26, 0
      %p95 = por %p93, %p94
      %s97 = sadd.s32 %s96, 1
      %p100 = scmp.eq.s32.totalorder %s20, 1
      %p101 = scmp.ne.s32.totalorder %s96, %s98
      %p102 = scmp.eq.s32.totalorder %s20, 0
      %p103 = por %p101, %p102
      %p104 = scmp.ne.s32.totalorder %s96, %s98
      %p105 = scmp.eq.s32.totalorder %s25, 1
      %p106 = por %p104, %p105
      %p107 = scmp.ne.s32.totalorder %s98, %s99
      %p108 = scmp.eq.s32.totalorder %s25, 0
      %p109 = por %p107, %p108
      %p110 = scmp.ne.s32.totalorder %s98, %s99
      %p111 = scmp.eq.s32.totalorder %s26, 1
      %p112 = por %p110, %p111
      %p114 = scmp.ne.s32.totalorder %s99, %s113
      %p115 = scmp.eq.s32.totalorder %s26, 0
      %p116 = por %p114, %p115
      %s118 = sadd.s32 %s117, 1
      %p121 = scmp.eq.s32.totalorder %s20, 1
      %p122 = scmp.ne.s32.totalorder %s117, %s119
      %p123 = scmp.eq.s32.totalorder %s20, 0
      %p124 = por %p122, %p123
      %p125 = scmp.ne.s32.totalorder %s117, %s119
      %p126 = scmp.eq.s32.totalorder %s25, 1
      %p127 = por %p125, %p126
      %p128 = scmp.ne.s32.totalorder %s119, %s120
      %p129 = scmp.eq.s32.totalorder %s25, 0
      %p130 = por %p128, %p129
      %p131 = scmp.ne.s32.totalorder %s119, %s120
      %p132 = scmp.eq.s32.totalorder %s26, 1
      %p133 = por %p131, %p132
      %p135 = scmp.ne.s32.totalorder %s120, %s134
      %p136 = scmp.eq.s32.totalorder %s26, 0
      %p137 = por %p135, %p136
      %s139 = sadd.s32 %s138, 1
      %p142 = scmp.eq.s32.totalorder %s20, 1
      %p143 = scmp.ne.s32.totalorder %s138, %s140
      %p144 = scmp.eq.s32.totalorder %s20, 0
      %p145 = por %p143, %p144
      %p146 = scmp.ne.s32.totalorder %s138, %s140
      %p147 = scmp.eq.s32.totalorder %s25, 1
      %p148 = por %p146, %p147
      %p149 = scmp.ne.s32.totalorder %s140, %s141
      %p150 = scmp.eq.s32.totalorder %s25, 0
      %p151 = por %p149, %p150
      %p152 = scmp.ne.s32.totalorder %s140, %s141
      %p153 = scmp.eq.s32.totalorder %s26, 1
      %p154 = por %p152, %p153
      %p156 = scmp.ne.s32.totalorder %s141, %s155
      %p157 = scmp.eq.s32.totalorder %s26, 0
      %p158 = por %p156, %p157
      %s159 = ssub.s32 %s20, %s27
      %p160 = scmp.eq.s32.totalorder %s159, 0
      %s162 = sadd.s32 %s161, 1
      %s163 = scalar_select %p160, %s161, %s162
      %p166 = pneg %p160
      %p167 = scmp.eq.s32.totalorder %s20, 1
      %p168 = por %p166, %p167
      %p169 = scmp.ne.s32.totalorder %s161, %s164
      %p170 = scmp.eq.s32.totalorder %s20, 0
      %p171 = por %p169, %p170
      %p172 = scmp.ne.s32.totalorder %s161, %s164
      %p173 = scmp.eq.s32.totalorder %s25, 1
      %p174 = por %p172, %p173
      %p175 = scmp.ne.s32.totalorder %s164, %s165
      %p176 = scmp.eq.s32.totalorder %s25, 0
      %p177 = por %p175, %p176
      %p178 = scmp.ne.s32.totalorder %s164, %s165
      %p179 = scmp.eq.s32.totalorder %s26, 1
      %p180 = por %p178, %p179
      %p182 = scmp.ne.s32.totalorder %s165, %s181
      %p183 = scmp.eq.s32.totalorder %s26, 0
      %p184 = por %p182, %p183
      %p185 = scmp.le.s32.totalorder 1, %s20
      %p186 = scmp.lt.s32.totalorder %s20, 3
      %p187 = pnand %p185, %p186
      %p188 = pneg %p187
      // Predicated region
      $region9: #{tpu_custom_call.1} parent=5 // pred_check
        _
      $region10: #{tpu_custom_call.1} parent=5 // pred_check_branch
        %190 = sbr.rel (%p187) target = $region12
      $region11: #{tpu_custom_call.1} parent=5 // pred_region
        %s191 = ssub.s32 %s20, 1
        // Predicated region
        $region13: #{tpu_custom_call.1} parent=11 // pred_check
          %p192 = pneg %p67
        $region14: #{tpu_custom_call.1} parent=11 // pred_check_branch
          %194 = sbr.rel (%p192) target = $region16
        $region15: #{tpu_custom_call.1} parent=11 // pred_region
          %s196 = ssub.s32 6144, 6144
          %197 = vsyncadd [#allocation7], %s196
          %s198 = sshll.u32 [#allocation6], 4
          %s199 = int_to_ptr.vmem [resolvable:$true] %s198
          %204 = dma.hbm_to_vmem [thread:$0]  %s1, 6144, %s199, [#allocation7], 128, 128, 8
        $region16: #{tpu_custom_call.1} parent=11 // pred_fallthru
          _
        // Predicated region
        $region17: #{tpu_custom_call.1} parent=11 // pred_check
          %p205 = pneg %p88
        $region18: #{tpu_custom_call.1} parent=11 // pred_check_branch
          %207 = sbr.rel (%p205) target = $region20
        $region19: #{tpu_custom_call.1} parent=11 // pred_region
          _
        $region20: #{tpu_custom_call.1} parent=11 // pred_fallthru
          _
        // Predicated region
        $region21: #{tpu_custom_call.1} parent=11 // pred_check
          %p208 = pneg %p109
        $region22: #{tpu_custom_call.1} parent=11 // pred_check_branch
          %210 = sbr.rel (%p208) target = $region24
        $region23: #{tpu_custom_call.1} parent=11 // pred_region
          %s212 = ssub.s32 2048, 2048
          %213 = vsyncadd [#allocation7], %s212
          %s214 = sshll.u32 [#allocation8], 4
          %s215 = int_to_ptr.vmem [resolvable:$true] %s214
          %220 = dma.hbm_to_vmem [thread:$0]  %s3, 2048, %s215, [#allocation7], 128, 128, 8
        $region24: #{tpu_custom_call.1} parent=11 // pred_fallthru
          _
        // Predicated region
        $region25: #{tpu_custom_call.1} parent=11 // pred_check
          %p221 = pneg %p130
        $region26: #{tpu_custom_call.1} parent=11 // pred_check_branch
          %223 = sbr.rel (%p221) target = $region28
        $region27: #{tpu_custom_call.1} parent=11 // pred_region
          %s225 = ssub.s32 6144, 6144
          %226 = vsyncadd [#allocation10], %s225
          %s227 = sshll.u32 [#allocation9], 4
          %s228 = int_to_ptr.vmem [resolvable:$true] %s227
          %233 = dma.hbm_to_vmem [thread:$0]  %s4, 6144, %s228, [#allocation10], 128, 128, 8
        $region28: #{tpu_custom_call.1} parent=11 // pred_fallthru
          _
        // Predicated region
        $region29: #{tpu_custom_call.1} parent=11 // pred_check
          %p234 = pneg %p151
        $region30: #{tpu_custom_call.1} parent=11 // pred_check_branch
          %236 = sbr.rel (%p234) target = $region32
        $region31: #{tpu_custom_call.1} parent=11 // pred_region
          _
        $region32: #{tpu_custom_call.1} parent=11 // pred_fallthru
          _
      $region12: #{tpu_custom_call.1} parent=5 // pred_fallthru
        _
      %p237 = scmp.lt.s32.totalorder %s20, 2
      // Predicated region
      $region33: #{tpu_custom_call.1} parent=5 // pred_check
        %p238 = pneg %p237
      $region34: #{tpu_custom_call.1} parent=5 // pred_check_branch
        %240 = sbr.rel (%p238) target = $region36
      $region35: #{tpu_custom_call.1} parent=5 // pred_region
        // Predicated region
        $region37: #{tpu_custom_call.1} parent=35 // pred_check
          %p241 = pneg %p40
        $region38: #{tpu_custom_call.1} parent=35 // pred_check_branch
          %243 = sbr.rel (%p241) target = $region40
        $region39: #{tpu_custom_call.1} parent=35 // pred_region
          %s244 = sand.u32 %s30, 1
          %s245 = scalar_lea.sflag [#allocation4], %s244
          %s246 = sand.u32 %s30, 1
          %s247 = smul.addr %s246, 16
          %s248 = scalar_lea.vmem [#allocation3], %s247
          %s250 = ssub.s32 256, 256
          %251 = vsyncadd %s245, %s250
          %s252 = smul.addr %s20, 2
          %s253 = smul.addr %s252, 128
          %s254 = scalar_lea.hbm %s0, %s253
          %s255 = sshll.u32 %s248, 4
          %s256 = int_to_ptr.vmem [resolvable:$true] %s255
          %261 = dma.hbm_to_vmem [thread:$0]  %s254, 256, %s256, %s245, 128, 128, 8
        $region40: #{tpu_custom_call.1} parent=35 // pred_fallthru
          _
      $region36: #{tpu_custom_call.1} parent=5 // pred_fallthru
        _
      %p262 = scmp.le.s32.totalorder 1, %s20
      %p263 = scmp.lt.s32.totalorder %s20, 3
      %p264 = pnand %p262, %p263
      %p265 = pneg %p264
      // Predicated region
      $region41: #{tpu_custom_call.1} parent=5 // pred_check
        _
      $region42: #{tpu_custom_call.1} parent=5 // pred_check_branch
        %267 = sbr.rel (%p264) target = $region44
      $region43: #{tpu_custom_call.1} parent=5 // pred_region
        %s268 = ssub.s32 %s20, 1
        %s269 = sand.u32 %s33, 1
        %s270 = scalar_lea.sflag [#allocation4], %s269
        %s271 = sand.u32 %s33, 1
        %s272 = smul.addr %s271, 16
        %s273 = scalar_lea.vmem [#allocation3], %s272
        // Predicated region
        $region45: #{tpu_custom_call.1} parent=43 // pred_check
          %p274 = pneg %p46
        $region46: #{tpu_custom_call.1} parent=43 // pred_check_branch
          %276 = sbr.rel (%p274) target = $region48
        $region47: #{tpu_custom_call.1} parent=43 // pred_region
          %277 = dma.done %s270, 256
        $region48: #{tpu_custom_call.1} parent=43 // pred_fallthru
          _
        // Predicated region
        $region49: #{tpu_custom_call.1} parent=43 // pred_check
          %p278 = pneg %p67
        $region50: #{tpu_custom_call.1} parent=43 // pred_check_branch
          %280 = sbr.rel (%p278) target = $region52
        $region51: #{tpu_custom_call.1} parent=43 // pred_region
          %281 = dma.done [#allocation7], 6144
        $region52: #{tpu_custom_call.1} parent=43 // pred_fallthru
          _
        // Predicated region
        $region53: #{tpu_custom_call.1} parent=43 // pred_check
          %p282 = pneg %p109
        $region54: #{tpu_custom_call.1} parent=43 // pred_check_branch
          %284 = sbr.rel (%p282) target = $region56
        $region55: #{tpu_custom_call.1} parent=43 // pred_region
          %285 = dma.done [#allocation7], 2048
        $region56: #{tpu_custom_call.1} parent=43 // pred_fallthru
          _
        // Predicated region
        $region57: #{tpu_custom_call.1} parent=43 // pred_check
          %p286 = pneg %p130
        $region58: #{tpu_custom_call.1} parent=43 // pred_check_branch
          %288 = sbr.rel (%p286) target = $region60
        $region59: #{tpu_custom_call.1} parent=43 // pred_region
          %289 = dma.done [#allocation10], 6144
        $region60: #{tpu_custom_call.1} parent=43 // pred_fallthru
          _
        %s290 = sand.u32 %s33, 1
        %s291 = scalar_lea.sflag [#allocation4], %s290
        %s292 = sand.u32 %s33, 1
        %s293 = smul.addr %s292, 16
        %s294 = scalar_lea.vmem [#allocation3], %s293
        %p295 = pneg %p46
        %p296 = pneg %p43
        %p297 = pneg %p67
        %p298 = pneg %p64
        %p299 = pneg %p88
        %p300 = pneg %p85
        %p301 = pneg %p109
        %p302 = pneg %p106
        %p303 = pneg %p130
        %p304 = pneg %p127
        %p305 = pneg %p151
        %p306 = pneg %p148
        %p307 = pneg %p177
        %p308 = pneg %p174
        %s309 = sand.u32 %s164, 1
        %s310 = scalar_lea.sflag [#allocation5], %s309
        %s311 = sand.u32 %s164, 1
        %s312 = smul.addr %s311, 16
        %s313 = scalar_lea.vmem [#allocation11], %s312
        %v314 = vld [vmem:[%s273] sm:$0xff]
        %v315 = vld [vmem:[%s273 + $0x8] sm:$0xff]
        %316 = vst [vmem:[#allocation2] sm:$0x1] 0.0
        %317 = vst [vmem:[#allocation2 + $0x11] sm:$0x1] 0.0
        %318 = vst [vmem:[#allocation2 + $0x1] sm:$0xff] %v314
        %319 = vst [vmem:[#allocation2 + $0x9] sm:$0xff] %v315
        %v320 = vld [vmem:[#allocation2] sm:$0xff]
        %v321 = vld [vmem:[#allocation2 + $0x8] sm:$0xff]
        %v322 = vld [vmem:[#allocation6] sm:$0xff]
        %v323 = vld [vmem:[#allocation6 + $0x8] sm:$0xff]
        %v324 = vld [vmem:[#allocation6 + $0x10] sm:$0xff]
        %v325 = vld [vmem:[#allocation6 + $0x18] sm:$0xff]
        %v326 = vld [vmem:[#allocation6 + $0x20] sm:$0xff]
        %v327 = vld [vmem:[#allocation6 + $0x28] sm:$0xff]
        %v328 = vld [vmem:[#allocation6 + $0x30] sm:$0xff]
        %v329 = vld [vmem:[#allocation6 + $0x38] sm:$0xff]
        %v330 = vld [vmem:[#allocation6 + $0x40] sm:$0xff]
        %v331 = vld [vmem:[#allocation6 + $0x48] sm:$0xff]
        %v332 = vld [vmem:[#allocation6 + $0x50] sm:$0xff]
        %v333 = vld [vmem:[#allocation6 + $0x58] sm:$0xff]
        %v334 = vld [vmem:[#allocation6 + $0x60] sm:$0xff]
        %v335 = vld [vmem:[#allocation6 + $0x68] sm:$0xff]
        %v336 = vld [vmem:[#allocation6 + $0x70] sm:$0xff]
        %v337 = vld [vmem:[#allocation6 + $0x78] sm:$0xff]
        %v338 = vld [vmem:[#allocation2 + $0x1] sm:$0xff]
        %v339 = vld [vmem:[#allocation2 + $0x9] sm:$0xff]
        %s340 = scalar_lea.vmem [#allocation6], 128
        %v341 = vld [vmem:[%s340] sm:$0xff]
        %v342 = vld [vmem:[%s340 + $0x8] sm:$0xff]
        %v343 = vld [vmem:[%s340 + $0x10] sm:$0xff]
        %v344 = vld [vmem:[%s340 + $0x18] sm:$0xff]
        %v345 = vld [vmem:[%s340 + $0x20] sm:$0xff]
        %v346 = vld [vmem:[%s340 + $0x28] sm:$0xff]
        %v347 = vld [vmem:[%s340 + $0x30] sm:$0xff]
        %v348 = vld [vmem:[%s340 + $0x38] sm:$0xff]
        %v349 = vld [vmem:[%s340 + $0x40] sm:$0xff]
        %v350 = vld [vmem:[%s340 + $0x48] sm:$0xff]
        %v351 = vld [vmem:[%s340 + $0x50] sm:$0xff]
        %v352 = vld [vmem:[%s340 + $0x58] sm:$0xff]
        %v353 = vld [vmem:[%s340 + $0x60] sm:$0xff]
        %v354 = vld [vmem:[%s340 + $0x68] sm:$0xff]
        %v355 = vld [vmem:[%s340 + $0x70] sm:$0xff]
        %v356 = vld [vmem:[%s340 + $0x78] sm:$0xff]
        %357 = vmatprep.subr.mxu0 0.0
        %358 = vmatpush1.msra.mxu0 %v356
        %359 = vmatprep.subr.mxu0 0.0
        %360 = vmatpush1.msra.mxu0 %v355
        %361 = vmatprep.subr.mxu0 0.0
        %362 = vmatpush1.msra.mxu0 %v354
        %363 = vmatprep.subr.mxu0 0.0
        %364 = vmatpush1.msra.mxu0 %v353
        %365 = vmatprep.subr.mxu0 0.0
        %366 = vmatpush1.msra.mxu0 %v352
        %367 = vmatprep.subr.mxu0 0.0
        %368 = vmatpush1.msra.mxu0 %v351
        %369 = vmatprep.subr.mxu0 0.0
        %370 = vmatpush1.msra.mxu0 %v350
        %371 = vmatprep.subr.mxu0 0.0
        %372 = vmatpush1.msra.mxu0 %v349
        %373 = vmatprep.subr.mxu0 0.0
        %374 = vmatpush1.msra.mxu0 %v348
        %375 = vmatprep.subr.mxu0 0.0
        %376 = vmatpush1.msra.mxu0 %v347
        %377 = vmatprep.subr.mxu0 0.0
        %378 = vmatpush1.msra.mxu0 %v346
        %379 = vmatprep.subr.mxu0 0.0
        %380 = vmatpush1.msra.mxu0 %v345
        %381 = vmatprep.subr.mxu0 0.0
        %382 = vmatpush1.msra.mxu0 %v344
        %383 = vmatprep.subr.mxu0 0.0
        %384 = vmatpush1.msra.mxu0 %v343
        %385 = vmatprep.subr.mxu0 0.0
        %386 = vmatpush1.msra.mxu0 %v342
        %387 = vmatprep.subr.mxu0 0.0
        %388 = vmatpush1.msra.mxu0 %v341
        %389 = vmatprep.subr.mxu0 0.0
        %390 = vmatpush2.msra.mxu0 0.0
        %391 = vmatprep.subr.mxu0 0.0
        %392 = vmatpush2.msra.mxu0 0.0
        %393 = vmatprep.subr.mxu0 0.0
        %394 = vmatpush2.msra.mxu0 0.0
        %395 = vmatprep.subr.mxu0 0.0
        %396 = vmatpush2.msra.mxu0 0.0
        %397 = vmatprep.subr.mxu0 0.0
        %398 = vmatpush2.msra.mxu0 0.0
        %399 = vmatprep.subr.mxu0 0.0
        %400 = vmatpush2.msra.mxu0 0.0
        %401 = vmatprep.subr.mxu0 0.0
        %402 = vmatpush2.msra.mxu0 0.0
        %403 = vmatprep.subr.mxu0 0.0
        %404 = vmatpush2.msra.mxu0 0.0
        %405 = vmatprep.subr.mxu0 0.0
        %406 = vmatpush2.msra.mxu0 0.0
        %407 = vmatprep.subr.mxu0 0.0
        %408 = vmatpush2.msra.mxu0 0.0
        %409 = vmatprep.subr.mxu0 0.0
        %410 = vmatpush2.msra.mxu0 0.0
        %411 = vmatprep.subr.mxu0 0.0
        %412 = vmatpush2.msra.mxu0 0.0
        %413 = vmatprep.subr.mxu0 0.0
        %414 = vmatpush2.msra.mxu0 0.0
        %415 = vmatprep.subr.mxu0 0.0
        %416 = vmatpush2.msra.mxu0 0.0
        %417 = vmatprep.subr.mxu0 0.0
        %418 = vmatpush2.msra.mxu0 0.0
        %419 = vmatprep.subr.mxu0 0.0
        %420 = vmatpush2.msra.mxu0 0.0
        %421 = vmatprep.mubr.f32.mxu0 0.0
        %422 = vmatmul.mubr.f32.gmra.mxu0 %v338
        %v423 = vpop.f32.mrf.mxu0
        %v424 = vadd.f32 0.0, %v423
        %v425 = vpop.f32.mrf.mxu0
        %426 = vmatprep.mubr.f32.mxu0 0.0
        %427 = vmatmul.mubr.f32.gmra.mxu0 %v339
        %v428 = vpop.f32.mrf.mxu0
        %v429 = vadd.f32 0.0, %v428
        %v430 = vpop.f32.mrf.mxu0
        %431 = vdwg.mxu0
        %432 = vmatprep.subr.mxu0 0.0
        %433 = vmatpush1.msra.mxu0 %v337
        %434 = vmatprep.subr.mxu0 0.0
        %435 = vmatpush1.msra.mxu0 %v336
        %436 = vmatprep.subr.mxu0 0.0
        %437 = vmatpush1.msra.mxu0 %v335
        %438 = vmatprep.subr.mxu0 0.0
        %439 = vmatpush1.msra.mxu0 %v334
        %440 = vmatprep.subr.mxu0 0.0
        %441 = vmatpush1.msra.mxu0 %v333
        %442 = vmatprep.subr.mxu0 0.0
        %443 = vmatpush1.msra.mxu0 %v332
        %444 = vmatprep.subr.mxu0 0.0
        %445 = vmatpush1.msra.mxu0 %v331
        %446 = vmatprep.subr.mxu0 0.0
        %447 = vmatpush1.msra.mxu0 %v330
        %448 = vmatprep.subr.mxu0 0.0
        %449 = vmatpush1.msra.mxu0 %v329
        %450 = vmatprep.subr.mxu0 0.0
        %451 = vmatpush1.msra.mxu0 %v328
        %452 = vmatprep.subr.mxu0 0.0
        %453 = vmatpush1.msra.mxu0 %v327
        %454 = vmatprep.subr.mxu0 0.0
        %455 = vmatpush1.msra.mxu0 %v326
        %456 = vmatprep.subr.mxu0 0.0
        %457 = vmatpush1.msra.mxu0 %v325
        %458 = vmatprep.subr.mxu0 0.0
        %459 = vmatpush1.msra.mxu0 %v324
        %460 = vmatprep.subr.mxu0 0.0
        %461 = vmatpush1.msra.mxu0 %v323
        %462 = vmatprep.subr.mxu0 0.0
        %463 = vmatpush1.msra.mxu0 %v322
        %464 = vmatprep.subr.mxu0 0.0
        %465 = vmatpush2.msra.mxu0 0.0
        %466 = vmatprep.subr.mxu0 0.0
        %467 = vmatpush2.msra.mxu0 0.0
        %468 = vmatprep.subr.mxu0 0.0
        %469 = vmatpush2.msra.mxu0 0.0
        %470 = vmatprep.subr.mxu0 0.0
        %471 = vmatpush2.msra.mxu0 0.0
        %472 = vmatprep.subr.mxu0 0.0
        %473 = vmatpush2.msra.mxu0 0.0
        %474 = vmatprep.subr.mxu0 0.0
        %475 = vmatpush2.msra.mxu0 0.0
        %476 = vmatprep.subr.mxu0 0.0
        %477 = vmatpush2.msra.mxu0 0.0
        %478 = vmatprep.subr.mxu0 0.0
        %479 = vmatpush2.msra.mxu0 0.0
        %480 = vmatprep.subr.mxu0 0.0
        %481 = vmatpush2.msra.mxu0 0.0
        %482 = vmatprep.subr.mxu0 0.0
        %483 = vmatpush2.msra.mxu0 0.0
        %484 = vmatprep.subr.mxu0 0.0
        %485 = vmatpush2.msra.mxu0 0.0
        %486 = vmatprep.subr.mxu0 0.0
        %487 = vmatpush2.msra.mxu0 0.0
        %488 = vmatprep.subr.mxu0 0.0
        %489 = vmatpush2.msra.mxu0 0.0
        %490 = vmatprep.subr.mxu0 0.0
        %491 = vmatpush2.msra.mxu0 0.0
        %492 = vmatprep.subr.mxu0 0.0
        %493 = vmatpush2.msra.mxu0 0.0
        %494 = vmatprep.subr.mxu0 0.0
        %495 = vmatpush2.msra.mxu0 0.0
        %496 = vmatprep.mubr.f32.mxu0 0.0
        %497 = vmatmul.mubr.f32.gmra.mxu0 %v320
        %v498 = vpop.f32.mrf.mxu0
        %v499 = vadd.f32 %v424, %v498
        %v500 = vpop.f32.mrf.mxu0
        %501 = vmatprep.mubr.f32.mxu0 0.0
        %502 = vmatmul.mubr.f32.gmra.mxu0 %v321
        %v503 = vpop.f32.mrf.mxu0
        %v504 = vadd.f32 %v429, %v503
        %v505 = vpop.f32.mrf.mxu0
        %506 = vdwg.mxu0
        %v507 = vld [vmem:[#allocation2 + $0x2] sm:$0xff]
        %v508 = vld [vmem:[#allocation2 + $0xa] sm:$0xff]
        %s509 = scalar_lea.vmem [#allocation6], 256
        %v510 = vld [vmem:[%s509] sm:$0xff]
        %v511 = vld [vmem:[%s509 + $0x8] sm:$0xff]
        %v512 = vld [vmem:[%s509 + $0x10] sm:$0xff]
        %v513 = vld [vmem:[%s509 + $0x18] sm:$0xff]
        %v514 = vld [vmem:[%s509 + $0x20] sm:$0xff]
        %v515 = vld [vmem:[%s509 + $0x28] sm:$0xff]
        %v516 = vld [vmem:[%s509 + $0x30] sm:$0xff]
        %v517 = vld [vmem:[%s509 + $0x38] sm:$0xff]
        %v518 = vld [vmem:[%s509 + $0x40] sm:$0xff]
        %v519 = vld [vmem:[%s509 + $0x48] sm:$0xff]
        %v520 = vld [vmem:[%s509 + $0x50] sm:$0xff]
        %v521 = vld [vmem:[%s509 + $0x58] sm:$0xff]
        %v522 = vld [vmem:[%s509 + $0x60] sm:$0xff]
        %v523 = vld [vmem:[%s509 + $0x68] sm:$0xff]
        %v524 = vld [vmem:[%s509 + $0x70] sm:$0xff]
        %v525 = vld [vmem:[%s509 + $0x78] sm:$0xff]
        %526 = vmatprep.subr.mxu0 0.0
        %527 = vmatpush1.msra.mxu0 %v525
        %528 = vmatprep.subr.mxu0 0.0
        %529 = vmatpush1.msra.mxu0 %v524
        %530 = vmatprep.subr.mxu0 0.0
        %531 = vmatpush1.msra.mxu0 %v523
        %532 = vmatprep.subr.mxu0 0.0
        %533 = vmatpush1.msra.mxu0 %v522
        %534 = vmatprep.subr.mxu0 0.0
        %535 = vmatpush1.msra.mxu0 %v521
        %536 = vmatprep.subr.mxu0 0.0
        %537 = vmatpush1.msra.mxu0 %v520
        %538 = vmatprep.subr.mxu0 0.0
        %539 = vmatpush1.msra.mxu0 %v519
        %540 = vmatprep.subr.mxu0 0.0
        %541 = vmatpush1.msra.mxu0 %v518
        %542 = vmatprep.subr.mxu0 0.0
        %543 = vmatpush1.msra.mxu0 %v517
        %544 = vmatprep.subr.mxu0 0.0
        %545 = vmatpush1.msra.mxu0 %v516
        %546 = vmatprep.subr.mxu0 0.0
        %547 = vmatpush1.msra.mxu0 %v515
        %548 = vmatprep.subr.mxu0 0.0
        %549 = vmatpush1.msra.mxu0 %v514
        %550 = vmatprep.subr.mxu0 0.0
        %551 = vmatpush1.msra.mxu0 %v513
        %552 = vmatprep.subr.mxu0 0.0
        %553 = vmatpush1.msra.mxu0 %v512
        %554 = vmatprep.subr.mxu0 0.0
        %555 = vmatpush1.msra.mxu0 %v511
        %556 = vmatprep.subr.mxu0 0.0
        %557 = vmatpush1.msra.mxu0 %v510
        %558 = vmatprep.subr.mxu0 0.0
        %559 = vmatpush2.msra.mxu0 0.0
        %560 = vmatprep.subr.mxu0 0.0
        %561 = vmatpush2.msra.mxu0 0.0
        %562 = vmatprep.subr.mxu0 0.0
        %563 = vmatpush2.msra.mxu0 0.0
        %564 = vmatprep.subr.mxu0 0.0
        %565 = vmatpush2.msra.mxu0 0.0
        %566 = vmatprep.subr.mxu0 0.0
        %567 = vmatpush2.msra.mxu0 0.0
        %568 = vmatprep.subr.mxu0 0.0
        %569 = vmatpush2.msra.mxu0 0.0
        %570 = vmatprep.subr.mxu0 0.0
        %571 = vmatpush2.msra.mxu0 0.0
        %572 = vmatprep.subr.mxu0 0.0
        %573 = vmatpush2.msra.mxu0 0.0
        %574 = vmatprep.subr.mxu0 0.0
        %575 = vmatpush2.msra.mxu0 0.0
        %576 = vmatprep.subr.mxu0 0.0
        %577 = vmatpush2.msra.mxu0 0.0
        %578 = vmatprep.subr.mxu0 0.0
        %579 = vmatpush2.msra.mxu0 0.0
        %580 = vmatprep.subr.mxu0 0.0
        %581 = vmatpush2.msra.mxu0 0.0
        %582 = vmatprep.subr.mxu0 0.0
        %583 = vmatpush2.msra.mxu0 0.0
        %584 = vmatprep.subr.mxu0 0.0
        %585 = vmatpush2.msra.mxu0 0.0
        %586 = vmatprep.subr.mxu0 0.0
        %587 = vmatpush2.msra.mxu0 0.0
        %588 = vmatprep.subr.mxu0 0.0
        %589 = vmatpush2.msra.mxu0 0.0
        %590 = vmatprep.mubr.f32.mxu0 0.0
        %591 = vmatmul.mubr.f32.gmra.mxu0 %v507
        %v592 = vpop.f32.mrf.mxu0
        %v593 = vadd.f32 0.0, %v592
        %v594 = vpop.f32.mrf.mxu0
        %595 = vmatprep.mubr.f32.mxu0 0.0
        %596 = vmatmul.mubr.f32.gmra.mxu0 %v508
        %v597 = vpop.f32.mrf.mxu0
        %v598 = vadd.f32 0.0, %v597
        %v599 = vpop.f32.mrf.mxu0
        %600 = vdwg.mxu0
        %v601 = vadd.f32 %v499, %v593
        %v602 = vadd.f32 %v504, %v598
        %v603 = vld [vmem:[%s2] sm:$0x1]
        %v605 = vlaneseq
        %v606 = vshrl.u32 %v605, 7
        %v607 = vsub.s32 0, %v606
        %v608 = vrot.slane %v603, %v607
        %v610 = vadd.f32 %v601, %v608
        %v611 = vadd.f32 %v602, %v608
        %v612 = vadd.f32 %v610, %v611
        %v613 = vrot.slane %v612, 4
        %v614 = vadd.f32 %v612, %v613
        %v615 = vrot.slane %v614, 2
        %v616 = vadd.f32 %v614, %v615
        %v617 = vrot.slane %v616, 1
        %v618 = vadd.f32 %v616, %v617
        %v619 = vld [vmem:[#allocation8] sm:$0xff]
        %v620 = vld [vmem:[#allocation8 + $0x8] sm:$0xff]
        %v621 = vld [vmem:[#allocation8 + $0x10] sm:$0xff]
        %v622 = vld [vmem:[#allocation8 + $0x18] sm:$0xff]
        %v623 = vld [vmem:[#allocation8 + $0x20] sm:$0xff]
        %v624 = vld [vmem:[#allocation8 + $0x28] sm:$0xff]
        %v625 = vld [vmem:[#allocation8 + $0x30] sm:$0xff]
        %v626 = vld [vmem:[#allocation8 + $0x38] sm:$0xff]
        %v627 = vld [vmem:[#allocation8 + $0x40] sm:$0xff]
        %v628 = vld [vmem:[#allocation8 + $0x48] sm:$0xff]
        %v629 = vld [vmem:[#allocation8 + $0x50] sm:$0xff]
        %v630 = vld [vmem:[#allocation8 + $0x58] sm:$0xff]
        %v631 = vld [vmem:[#allocation8 + $0x60] sm:$0xff]
        %v632 = vld [vmem:[#allocation8 + $0x68] sm:$0xff]
        %v633 = vld [vmem:[#allocation8 + $0x70] sm:$0xff]
        %v634 = vld [vmem:[#allocation8 + $0x78] sm:$0xff]
        %635 = vmatprep.subr.mxu0 0.0
        %636 = vmatpush1.msra.mxu0 %v634
        %637 = vmatprep.subr.mxu0 0.0
        %638 = vmatpush1.msra.mxu0 %v633
        %639 = vmatprep.subr.mxu0 0.0
        %640 = vmatpush1.msra.mxu0 %v632
        %641 = vmatprep.subr.mxu0 0.0
        %642 = vmatpush1.msra.mxu0 %v631
        %643 = vmatprep.subr.mxu0 0.0
        %644 = vmatpush1.msra.mxu0 %v630
        %645 = vmatprep.subr.mxu0 0.0
        %646 = vmatpush1.msra.mxu0 %v629
        %647 = vmatprep.subr.mxu0 0.0
        %648 = vmatpush1.msra.mxu0 %v628
        %649 = vmatprep.subr.mxu0 0.0
        %650 = vmatpush1.msra.mxu0 %v627
        %651 = vmatprep.subr.mxu0 0.0
        %652 = vmatpush1.msra.mxu0 %v626
        %653 = vmatprep.subr.mxu0 0.0
        %654 = vmatpush1.msra.mxu0 %v625
        %655 = vmatprep.subr.mxu0 0.0
        %656 = vmatpush1.msra.mxu0 %v624
        %657 = vmatprep.subr.mxu0 0.0
        %658 = vmatpush1.msra.mxu0 %v623
        %659 = vmatprep.subr.mxu0 0.0
        %660 = vmatpush1.msra.mxu0 %v622
        %661 = vmatprep.subr.mxu0 0.0
        %662 = vmatpush1.msra.mxu0 %v621
        %663 = vmatprep.subr.mxu0 0.0
        %664 = vmatpush1.msra.mxu0 %v620
        %665 = vmatprep.subr.mxu0 0.0
        %666 = vmatpush1.msra.mxu0 %v619
        %667 = vmatprep.subr.mxu0 0.0
        %668 = vmatpush2.msra.mxu0 0.0
        %669 = vmatprep.subr.mxu0 0.0
        %670 = vmatpush2.msra.mxu0 0.0
        %671 = vmatprep.subr.mxu0 0.0
        %672 = vmatpush2.msra.mxu0 0.0
        %673 = vmatprep.subr.mxu0 0.0
        %674 = vmatpush2.msra.mxu0 0.0
        %675 = vmatprep.subr.mxu0 0.0
        %676 = vmatpush2.msra.mxu0 0.0
        %677 = vmatprep.subr.mxu0 0.0
        %678 = vmatpush2.msra.mxu0 0.0
        %679 = vmatprep.subr.mxu0 0.0
        %680 = vmatpush2.msra.mxu0 0.0
        %681 = vmatprep.subr.mxu0 0.0
        %682 = vmatpush2.msra.mxu0 0.0
        %683 = vmatprep.subr.mxu0 0.0
        %684 = vmatpush2.msra.mxu0 0.0
        %685 = vmatprep.subr.mxu0 0.0
        %686 = vmatpush2.msra.mxu0 0.0
        %687 = vmatprep.subr.mxu0 0.0
        %688 = vmatpush2.msra.mxu0 0.0
        %689 = vmatprep.subr.mxu0 0.0
        %690 = vmatpush2.msra.mxu0 0.0
        %691 = vmatprep.subr.mxu0 0.0
        %692 = vmatpush2.msra.mxu0 0.0
        %693 = vmatprep.subr.mxu0 0.0
        %694 = vmatpush2.msra.mxu0 0.0
        %695 = vmatprep.subr.mxu0 0.0
        %696 = vmatpush2.msra.mxu0 0.0
        %697 = vmatprep.subr.mxu0 0.0
        %698 = vmatpush2.msra.mxu0 0.0
        %699 = vmatprep.mubr.f32.mxu0 0.0
        %700 = vmatmul.mubr.f32.gmra.mxu0 %v618
        %v701 = vpop.f32.mrf.mxu0
        %v702 = vadd.f32 0.0, %v701
        %v703 = vpop.f32.mrf.mxu0
        %704 = vdwg.mxu0
        %v705 = vxor.u32 %v702, 2147483648
        %v706 = vmul.f32 %v705, 1.442695
        %v707 = vpow.pop %v706
        %v708 = vadd.f32 %v707, 1.0
        %v709 = vrcp.pop %v708
        %v710 = vmul.f32 1.0, %v709
        %v711 = vlaneseq
        %v712 = vshrl.u32 %v711, 7
        %v713 = vsub.s32 0, %v712
        %v714 = vrot.slane %v710, %v713
        %v715 = vmul.f32 %v610, %v714
        %v716 = vmul.f32 %v611, %v714
        %717 = vst [vmem:[#allocation2 + $0x1] sm:$0xff] %v715
        %718 = vst [vmem:[#allocation2 + $0x9] sm:$0xff] %v716
        %v719 = vld [vmem:[#allocation2] sm:$0xff]
        %v720 = vld [vmem:[#allocation2 + $0x8] sm:$0xff]
        %v721 = vld [vmem:[#allocation9] sm:$0xff]
        %v722 = vld [vmem:[#allocation9 + $0x8] sm:$0xff]
        %v723 = vld [vmem:[#allocation9 + $0x10] sm:$0xff]
        %v724 = vld [vmem:[#allocation9 + $0x18] sm:$0xff]
        %v725 = vld [vmem:[#allocation9 + $0x20] sm:$0xff]
        %v726 = vld [vmem:[#allocation9 + $0x28] sm:$0xff]
        %v727 = vld [vmem:[#allocation9 + $0x30] sm:$0xff]
        %v728 = vld [vmem:[#allocation9 + $0x38] sm:$0xff]
        %v729 = vld [vmem:[#allocation9 + $0x40] sm:$0xff]
        %v730 = vld [vmem:[#allocation9 + $0x48] sm:$0xff]
        %v731 = vld [vmem:[#allocation9 + $0x50] sm:$0xff]
        %v732 = vld [vmem:[#allocation9 + $0x58] sm:$0xff]
        %v733 = vld [vmem:[#allocation9 + $0x60] sm:$0xff]
        %v734 = vld [vmem:[#allocation9 + $0x68] sm:$0xff]
        %v735 = vld [vmem:[#allocation9 + $0x70] sm:$0xff]
        %v736 = vld [vmem:[#allocation9 + $0x78] sm:$0xff]
        %v737 = vld [vmem:[#allocation2 + $0x1] sm:$0xff]
        %v738 = vld [vmem:[#allocation2 + $0x9] sm:$0xff]
        %s739 = scalar_lea.vmem [#allocation9], 128
        %v740 = vld [vmem:[%s739] sm:$0xff]
        %v741 = vld [vmem:[%s739 + $0x8] sm:$0xff]
        %v742 = vld [vmem:[%s739 + $0x10] sm:$0xff]
        %v743 = vld [vmem:[%s739 + $0x18] sm:$0xff]
        %v744 = vld [vmem:[%s739 + $0x20] sm:$0xff]
        %v745 = vld [vmem:[%s739 + $0x28] sm:$0xff]
        %v746 = vld [vmem:[%s739 + $0x30] sm:$0xff]
        %v747 = vld [vmem:[%s739 + $0x38] sm:$0xff]
        %v748 = vld [vmem:[%s739 + $0x40] sm:$0xff]
        %v749 = vld [vmem:[%s739 + $0x48] sm:$0xff]
        %v750 = vld [vmem:[%s739 + $0x50] sm:$0xff]
        %v751 = vld [vmem:[%s739 + $0x58] sm:$0xff]
        %v752 = vld [vmem:[%s739 + $0x60] sm:$0xff]
        %v753 = vld [vmem:[%s739 + $0x68] sm:$0xff]
        %v754 = vld [vmem:[%s739 + $0x70] sm:$0xff]
        %v755 = vld [vmem:[%s739 + $0x78] sm:$0xff]
        %756 = vmatprep.subr.mxu0 0.0
        %757 = vmatpush1.msra.mxu0 %v755
        %758 = vmatprep.subr.mxu0 0.0
        %759 = vmatpush1.msra.mxu0 %v754
        %760 = vmatprep.subr.mxu0 0.0
        %761 = vmatpush1.msra.mxu0 %v753
        %762 = vmatprep.subr.mxu0 0.0
        %763 = vmatpush1.msra.mxu0 %v752
        %764 = vmatprep.subr.mxu0 0.0
        %765 = vmatpush1.msra.mxu0 %v751
        %766 = vmatprep.subr.mxu0 0.0
        %767 = vmatpush1.msra.mxu0 %v750
        %768 = vmatprep.subr.mxu0 0.0
        %769 = vmatpush1.msra.mxu0 %v749
        %770 = vmatprep.subr.mxu0 0.0
        %771 = vmatpush1.msra.mxu0 %v748
        %772 = vmatprep.subr.mxu0 0.0
        %773 = vmatpush1.msra.mxu0 %v747
        %774 = vmatprep.subr.mxu0 0.0
        %775 = vmatpush1.msra.mxu0 %v746
        %776 = vmatprep.subr.mxu0 0.0
        %777 = vmatpush1.msra.mxu0 %v745
        %778 = vmatprep.subr.mxu0 0.0
        %779 = vmatpush1.msra.mxu0 %v744
        %780 = vmatprep.subr.mxu0 0.0
        %781 = vmatpush1.msra.mxu0 %v743
        %782 = vmatprep.subr.mxu0 0.0
        %783 = vmatpush1.msra.mxu0 %v742
        %784 = vmatprep.subr.mxu0 0.0
        %785 = vmatpush1.msra.mxu0 %v741
        %786 = vmatprep.subr.mxu0 0.0
        %787 = vmatpush1.msra.mxu0 %v740
        %788 = vmatprep.subr.mxu0 0.0
        %789 = vmatpush2.msra.mxu0 0.0
        %790 = vmatprep.subr.mxu0 0.0
        %791 = vmatpush2.msra.mxu0 0.0
        %792 = vmatprep.subr.mxu0 0.0
        %793 = vmatpush2.msra.mxu0 0.0
        %794 = vmatprep.subr.mxu0 0.0
        %795 = vmatpush2.msra.mxu0 0.0
        %796 = vmatprep.subr.mxu0 0.0
        %797 = vmatpush2.msra.mxu0 0.0
        %798 = vmatprep.subr.mxu0 0.0
        %799 = vmatpush2.msra.mxu0 0.0
        %800 = vmatprep.subr.mxu0 0.0
        %801 = vmatpush2.msra.mxu0 0.0
        %802 = vmatprep.subr.mxu0 0.0
        %803 = vmatpush2.msra.mxu0 0.0
        %804 = vmatprep.subr.mxu0 0.0
        %805 = vmatpush2.msra.mxu0 0.0
        %806 = vmatprep.subr.mxu0 0.0
        %807 = vmatpush2.msra.mxu0 0.0
        %808 = vmatprep.subr.mxu0 0.0
        %809 = vmatpush2.msra.mxu0 0.0
        %810 = vmatprep.subr.mxu0 0.0
        %811 = vmatpush2.msra.mxu0 0.0
        %812 = vmatprep.subr.mxu0 0.0
        %813 = vmatpush2.msra.mxu0 0.0
        %814 = vmatprep.subr.mxu0 0.0
        %815 = vmatpush2.msra.mxu0 0.0
        %816 = vmatprep.subr.mxu0 0.0
        %817 = vmatpush2.msra.mxu0 0.0
        %818 = vmatprep.subr.mxu0 0.0
        %819 = vmatpush2.msra.mxu0 0.0
        %820 = vmatprep.mubr.f32.mxu0 0.0
        %821 = vmatmul.mubr.f32.gmra.mxu0 %v737
        %v822 = vpop.f32.mrf.mxu0
        %v823 = vadd.f32 0.0, %v822
        %v824 = vpop.f32.mrf.mxu0
        %825 = vmatprep.mubr.f32.mxu0 0.0
        %826 = vmatmul.mubr.f32.gmra.mxu0 %v738
        %v827 = vpop.f32.mrf.mxu0
        %v828 = vadd.f32 0.0, %v827
        %v829 = vpop.f32.mrf.mxu0
        %830 = vdwg.mxu0
        %831 = vmatprep.subr.mxu0 0.0
        %832 = vmatpush1.msra.mxu0 %v736
        %833 = vmatprep.subr.mxu0 0.0
        %834 = vmatpush1.msra.mxu0 %v735
        %835 = vmatprep.subr.mxu0 0.0
        %836 = vmatpush1.msra.mxu0 %v734
        %837 = vmatprep.subr.mxu0 0.0
        %838 = vmatpush1.msra.mxu0 %v733
        %839 = vmatprep.subr.mxu0 0.0
        %840 = vmatpush1.msra.mxu0 %v732
        %841 = vmatprep.subr.mxu0 0.0
        %842 = vmatpush1.msra.mxu0 %v731
        %843 = vmatprep.subr.mxu0 0.0
        %844 = vmatpush1.msra.mxu0 %v730
        %845 = vmatprep.subr.mxu0 0.0
        %846 = vmatpush1.msra.mxu0 %v729
        %847 = vmatprep.subr.mxu0 0.0
        %848 = vmatpush1.msra.mxu0 %v728
        %849 = vmatprep.subr.mxu0 0.0
        %850 = vmatpush1.msra.mxu0 %v727
        %851 = vmatprep.subr.mxu0 0.0
        %852 = vmatpush1.msra.mxu0 %v726
        %853 = vmatprep.subr.mxu0 0.0
        %854 = vmatpush1.msra.mxu0 %v725
        %855 = vmatprep.subr.mxu0 0.0
        %856 = vmatpush1.msra.mxu0 %v724
        %857 = vmatprep.subr.mxu0 0.0
        %858 = vmatpush1.msra.mxu0 %v723
        %859 = vmatprep.subr.mxu0 0.0
        %860 = vmatpush1.msra.mxu0 %v722
        %861 = vmatprep.subr.mxu0 0.0
        %862 = vmatpush1.msra.mxu0 %v721
        %863 = vmatprep.subr.mxu0 0.0
        %864 = vmatpush2.msra.mxu0 0.0
        %865 = vmatprep.subr.mxu0 0.0
        %866 = vmatpush2.msra.mxu0 0.0
        %867 = vmatprep.subr.mxu0 0.0
        %868 = vmatpush2.msra.mxu0 0.0
        %869 = vmatprep.subr.mxu0 0.0
        %870 = vmatpush2.msra.mxu0 0.0
        %871 = vmatprep.subr.mxu0 0.0
        %872 = vmatpush2.msra.mxu0 0.0
        %873 = vmatprep.subr.mxu0 0.0
        %874 = vmatpush2.msra.mxu0 0.0
        %875 = vmatprep.subr.mxu0 0.0
        %876 = vmatpush2.msra.mxu0 0.0
        %877 = vmatprep.subr.mxu0 0.0
        %878 = vmatpush2.msra.mxu0 0.0
        %879 = vmatprep.subr.mxu0 0.0
        %880 = vmatpush2.msra.mxu0 0.0
        %881 = vmatprep.subr.mxu0 0.0
        %882 = vmatpush2.msra.mxu0 0.0
        %883 = vmatprep.subr.mxu0 0.0
        %884 = vmatpush2.msra.mxu0 0.0
        %885 = vmatprep.subr.mxu0 0.0
        %886 = vmatpush2.msra.mxu0 0.0
        %887 = vmatprep.subr.mxu0 0.0
        %888 = vmatpush2.msra.mxu0 0.0
        %889 = vmatprep.subr.mxu0 0.0
        %890 = vmatpush2.msra.mxu0 0.0
        %891 = vmatprep.subr.mxu0 0.0
        %892 = vmatpush2.msra.mxu0 0.0
        %893 = vmatprep.subr.mxu0 0.0
        %894 = vmatpush2.msra.mxu0 0.0
        %895 = vmatprep.mubr.f32.mxu0 0.0
        %896 = vmatmul.mubr.f32.gmra.mxu0 %v719
        %v897 = vpop.f32.mrf.mxu0
        %v898 = vadd.f32 %v823, %v897
        %v899 = vpop.f32.mrf.mxu0
        %900 = vmatprep.mubr.f32.mxu0 0.0
        %901 = vmatmul.mubr.f32.gmra.mxu0 %v720
        %v902 = vpop.f32.mrf.mxu0
        %v903 = vadd.f32 %v828, %v902
        %v904 = vpop.f32.mrf.mxu0
        %905 = vdwg.mxu0
        %v906 = vld [vmem:[#allocation2 + $0x2] sm:$0xff]
        %v907 = vld [vmem:[#allocation2 + $0xa] sm:$0xff]
        %s908 = scalar_lea.vmem [#allocation9], 256
        %v909 = vld [vmem:[%s908] sm:$0xff]
        %v910 = vld [vmem:[%s908 + $0x8] sm:$0xff]
        %v911 = vld [vmem:[%s908 + $0x10] sm:$0xff]
        %v912 = vld [vmem:[%s908 + $0x18] sm:$0xff]
        %v913 = vld [vmem:[%s908 + $0x20] sm:$0xff]
        %v914 = vld [vmem:[%s908 + $0x28] sm:$0xff]
        %v915 = vld [vmem:[%s908 + $0x30] sm:$0xff]
        %v916 = vld [vmem:[%s908 + $0x38] sm:$0xff]
        %v917 = vld [vmem:[%s908 + $0x40] sm:$0xff]
        %v918 = vld [vmem:[%s908 + $0x48] sm:$0xff]
        %v919 = vld [vmem:[%s908 + $0x50] sm:$0xff]
        %v920 = vld [vmem:[%s908 + $0x58] sm:$0xff]
        %v921 = vld [vmem:[%s908 + $0x60] sm:$0xff]
        %v922 = vld [vmem:[%s908 + $0x68] sm:$0xff]
        %v923 = vld [vmem:[%s908 + $0x70] sm:$0xff]
        %v924 = vld [vmem:[%s908 + $0x78] sm:$0xff]
        %925 = vmatprep.subr.mxu0 0.0
        %926 = vmatpush1.msra.mxu0 %v924
        %927 = vmatprep.subr.mxu0 0.0
        %928 = vmatpush1.msra.mxu0 %v923
        %929 = vmatprep.subr.mxu0 0.0
        %930 = vmatpush1.msra.mxu0 %v922
        %931 = vmatprep.subr.mxu0 0.0
        %932 = vmatpush1.msra.mxu0 %v921
        %933 = vmatprep.subr.mxu0 0.0
        %934 = vmatpush1.msra.mxu0 %v920
        %935 = vmatprep.subr.mxu0 0.0
        %936 = vmatpush1.msra.mxu0 %v919
        %937 = vmatprep.subr.mxu0 0.0
        %938 = vmatpush1.msra.mxu0 %v918
        %939 = vmatprep.subr.mxu0 0.0
        %940 = vmatpush1.msra.mxu0 %v917
        %941 = vmatprep.subr.mxu0 0.0
        %942 = vmatpush1.msra.mxu0 %v916
        %943 = vmatprep.subr.mxu0 0.0
        %944 = vmatpush1.msra.mxu0 %v915
        %945 = vmatprep.subr.mxu0 0.0
        %946 = vmatpush1.msra.mxu0 %v914
        %947 = vmatprep.subr.mxu0 0.0
        %948 = vmatpush1.msra.mxu0 %v913
        %949 = vmatprep.subr.mxu0 0.0
        %950 = vmatpush1.msra.mxu0 %v912
        %951 = vmatprep.subr.mxu0 0.0
        %952 = vmatpush1.msra.mxu0 %v911
        %953 = vmatprep.subr.mxu0 0.0
        %954 = vmatpush1.msra.mxu0 %v910
        %955 = vmatprep.subr.mxu0 0.0
        %956 = vmatpush1.msra.mxu0 %v909
        %957 = vmatprep.subr.mxu0 0.0
        %958 = vmatpush2.msra.mxu0 0.0
        %959 = vmatprep.subr.mxu0 0.0
        %960 = vmatpush2.msra.mxu0 0.0
        %961 = vmatprep.subr.mxu0 0.0
        %962 = vmatpush2.msra.mxu0 0.0
        %963 = vmatprep.subr.mxu0 0.0
        %964 = vmatpush2.msra.mxu0 0.0
        %965 = vmatprep.subr.mxu0 0.0
        %966 = vmatpush2.msra.mxu0 0.0
        %967 = vmatprep.subr.mxu0 0.0
        %968 = vmatpush2.msra.mxu0 0.0
        %969 = vmatprep.subr.mxu0 0.0
        %970 = vmatpush2.msra.mxu0 0.0
        %971 = vmatprep.subr.mxu0 0.0
        %972 = vmatpush2.msra.mxu0 0.0
        %973 = vmatprep.subr.mxu0 0.0
        %974 = vmatpush2.msra.mxu0 0.0
        %975 = vmatprep.subr.mxu0 0.0
        %976 = vmatpush2.msra.mxu0 0.0
        %977 = vmatprep.subr.mxu0 0.0
        %978 = vmatpush2.msra.mxu0 0.0
        %979 = vmatprep.subr.mxu0 0.0
        %980 = vmatpush2.msra.mxu0 0.0
        %981 = vmatprep.subr.mxu0 0.0
        %982 = vmatpush2.msra.mxu0 0.0
        %983 = vmatprep.subr.mxu0 0.0
        %984 = vmatpush2.msra.mxu0 0.0
        %985 = vmatprep.subr.mxu0 0.0
        %986 = vmatpush2.msra.mxu0 0.0
        %987 = vmatprep.subr.mxu0 0.0
        %988 = vmatpush2.msra.mxu0 0.0
        %989 = vmatprep.mubr.f32.mxu0 0.0
        %990 = vmatmul.mubr.f32.gmra.mxu0 %v906
        %v991 = vpop.f32.mrf.mxu0
        %v992 = vadd.f32 0.0, %v991
        %v993 = vpop.f32.mrf.mxu0
        %994 = vmatprep.mubr.f32.mxu0 0.0
        %995 = vmatmul.mubr.f32.gmra.mxu0 %v907
        %v996 = vpop.f32.mrf.mxu0
        %v997 = vadd.f32 0.0, %v996
        %v998 = vpop.f32.mrf.mxu0
        %999 = vdwg.mxu0
        %v1000 = vadd.f32 %v898, %v992
        %v1001 = vadd.f32 %v903, %v997
        %v1002 = vld [vmem:[%s5] sm:$0x1]
        %v1004 = vlaneseq
        %v1005 = vshrl.u32 %v1004, 7
        %v1006 = vsub.s32 0, %v1005
        %v1007 = vrot.slane %v1002, %v1006
        %v1009 = vadd.f32 %v1000, %v1007
        %v1010 = vadd.f32 %v1001, %v1007
        %v1011 = vadd.f32 %v1009, %v314
        %v1012 = vadd.f32 %v1010, %v315
        %1013 = vst [vmem:[%s313] sm:$0xff] %v1011
        %1014 = vst [vmem:[%s313 + $0x8] sm:$0xff] %v1012
        %s1015 = sand.u32 %s164, 1
        %s1016 = scalar_lea.sflag [#allocation5], %s1015
        %s1017 = sand.u32 %s164, 1
        %s1018 = smul.addr %s1017, 16
        %s1019 = scalar_lea.vmem [#allocation11], %s1018
        // Predicated region
        $region61: #{tpu_custom_call.1} parent=43 // pred_check
          %p1020 = pneg %p174
        $region62: #{tpu_custom_call.1} parent=43 // pred_check_branch
          %1022 = sbr.rel (%p1020) target = $region64
        $region63: #{tpu_custom_call.1} parent=43 // pred_region
          %s1024 = ssub.s32 256, 256
          %1025 = vsyncadd %s1016, %s1024
          %s1026 = smul.addr %s25, 2
          %s1027 = smul.addr %s1026, 128
          %s1028 = scalar_lea.hbm %s6, %s1027
          %s1029 = sshll.u32 %s1019, 4
          %s1030 = int_to_ptr.vmem [resolvable:$true] %s1029
          %1035 = dma.vmem_to_hbm [thread:$0]  %s1030, 256, %s1028, %s1016, 128, 128, 8
        $region64: #{tpu_custom_call.1} parent=43 // pred_fallthru
          _
      $region44: #{tpu_custom_call.1} parent=5 // pred_fallthru
        _
      %p1036 = scmp.le.s32.totalorder 2, %s20
      // Predicated region
      $region65: #{tpu_custom_call.1} parent=5 // pred_check
        %p1037 = pneg %p1036
      $region66: #{tpu_custom_call.1} parent=5 // pred_check_branch
        %1039 = sbr.rel (%p1037) target = $region68
      $region67: #{tpu_custom_call.1} parent=5 // pred_region
        %s1040 = ssub.s32 %s20, 2
        // Predicated region
        $region69: #{tpu_custom_call.1} parent=67 // pred_check
          %p1041 = pneg %p180
        $region70: #{tpu_custom_call.1} parent=67 // pred_check_branch
          %1043 = sbr.rel (%p1041) target = $region72
        $region71: #{tpu_custom_call.1} parent=67 // pred_region
          %s1044 = sand.u32 %s165, 1
          %s1045 = scalar_lea.sflag [#allocation5], %s1044
          %s1046 = sand.u32 %s165, 1
          %s1047 = smul.addr %s1046, 16
          %s1048 = scalar_lea.vmem [#allocation11], %s1047
          %1049 = dma.done %s1045, 256
        $region72: #{tpu_custom_call.1} parent=67 // pred_fallthru
          _
      $region68: #{tpu_custom_call.1} parent=5 // pred_fallthru
        _
    $region6: #{tpu_custom_call.1} parent=1 // loop_footer
      %s24 = sadd.s32 1, %s20
    $region7: #{tpu_custom_call.1} parent=1 // loop_footer_branch
      %19 = sbr.rel target = $region3
    $region8: #{tpu_custom_call.1} parent=1 // loop_exit
      _
    %1050 = vsyncpa [#allocation4], 1
    %s1051 = scalar_lea.sflag [#allocation4], 1
    %1052 = vsyncpa %s1051, 1
    %1053 = vsyncpa [#allocation7], 1
    %1054 = vsyncpa [#allocation10], 1
    %1055 = vsyncpa [#allocation5], 1
    %s1056 = scalar_lea.sflag [#allocation5], 1
    %1057 = vsyncpa %s1056, 1

</llo_original>
